<compile_context>
chip_gen: v7x
topology: tpu7x:2x2x1
jax: 0.10.0
libtpu: 0.0.40
codegen_flags: <defaults>
</compile_context>

<pallas_src>
import jax
import jax.numpy as jnp
from jax.experimental import pallas as pl
from jax.experimental.pallas import tpu as pltpu

_LANE = 128                      # TPU lane width
_VMEM_BUDGET = 40 * 2**20        # working-set target (fits v7x's 64 MiB VMEM)
_VMEM_LIMIT = 64 * 2**20         # scoped VMEM limit passed to Mosaic


def _round_up(x, m):
    return ((x + m - 1) // m) * m


def _pad2(a, rows, cols):
    pr, pc = rows - a.shape[0], cols - a.shape[1]
    if pr or pc:
        a = jnp.pad(a, ((0, pr), (0, pc)))
    return a


def _block_spec(shape, index_map, single_buffer=False):
    """BlockSpec helper; single-buffer constant operands when supported."""
    if single_buffer:
        try:
            return pl.BlockSpec(shape, index_map, pipeline_mode=pl.Buffered(1))
        except TypeError:  # older JAX without pipeline_mode kwarg
            return pl.BlockSpec(shape, index_map)
    return pl.BlockSpec(shape, index_map)


def _choose_tiles(B, N_pad, L_pad, itemsize, vmem_budget_bytes):
    """Pick (tile_b, tile_l) against a VMEM budget.

    tile_l: latent/contraction tile; only tiled when both weight slabs for a
            full-L step would not fit comfortably in the budget.
    tile_b: largest multiple of 8 (f32) / 16 (narrow dtypes) rows that fits,
            capped at 512, and kept small enough that the batch grid has at
            least 2 steps when possible (v7x megacore sharding).
    """
    row_mult = 8 if itemsize >= 4 else 16

    def weight_bytes(tl, nbuf):
        # W1 slab (N_pad, tl) + W2 slab (tl, N_pad) + biases, nbuf pipeline bufs.
        return nbuf * itemsize * (2 * N_pad * tl + tl + N_pad)

    tile_l = L_pad
    while tile_l > _LANE and weight_bytes(tile_l, 2) > vmem_budget_bytes // 2:
        tile_l = _round_up(tile_l // 2, _LANE)
    n_l = -(-L_pad // tile_l)
    w_bytes = weight_bytes(tile_l, 1 if n_l == 1 else 2)

    # Per batch-row VMEM: x + y tiles (double-buffered) + f32 acc + f32 h tile.
    per_row = 2 * 2 * N_pad * itemsize + 4 * N_pad + 4 * tile_l
    avail = max(vmem_budget_bytes - w_bytes, per_row * row_mult)
    tile_b = min(512, avail // per_row, _round_up(B, row_mult))
    tile_b = max(row_mult, (tile_b // row_mult) * row_mult)

    # Keep >= 2 batch tiles when the batch is big enough (2 TCs/chip on v7x).
    if tile_b >= _round_up(B, row_mult) and B > row_mult:
        tile_b = max(row_mult, _round_up(B, 2 * row_mult) // 2)

    return int(tile_b), int(tile_l)


def _dffn_kernel(x_ref, w1_ref, b1_ref, w2_ref, b2_ref, y_ref, acc_ref):
    # x_ref : (TB, Np)    w1_ref: (Np, TL)   b1_ref: (1, TL)
    # w2_ref: (TL, Np)    b2_ref: (1, Np)    y_ref : (TB, Np)
    # acc_ref: (TB, Np) f32 scratch, resident across the latent grid axis.
    li = pl.program_id(1)

    @pl.when(li == 0)
    def _():
        acc_ref[...] = jnp.zeros_like(acc_ref)

    x = x_ref[...]
    h = jnp.dot(x, w1_ref[...], preferred_element_type=jnp.float32)
    h = jnp.maximum(h + b1_ref[...].astype(jnp.float32), 0.0)     # ReLU (VPU)
    h = h.astype(x.dtype)       # feed MXU-native dtype (bf16 on v6e/v7x inputs)
    acc_ref[...] += jnp.dot(h, w2_ref[...], preferred_element_type=jnp.float32)

    @pl.when(li == pl.num_programs(1) - 1)
    def _():
        y = acc_ref[...] + b2_ref[...].astype(jnp.float32)
        y_ref[...] = jnp.maximum(y, 0.0).astype(y_ref.dtype)      # ReLU (VPU)


def dffn_forward(x, w_ih, b_ih, w_ho, b_ho, *, vmem_budget_bytes=_VMEM_BUDGET):
    """Fused 2-layer FFN forward. Returns (y_out, x) like the PyTorch module.

    x    : (B, N)
    w_ih : (N, L)  == ih_matrix.weight.T
    b_ih : (L,)
    w_ho : (L, N)  == ho_matrix.weight.T
    b_ho : (N,)
    """
    B, N = x.shape
    Nw, L = w_ih.shape
    assert Nw == N and w_ho.shape == (L, N)
    dtype = x.dtype
    itemsize = jnp.dtype(dtype).itemsize

    # Lane-dense padded dims + tiles.
    N_pad = _round_up(N, _LANE)
    L_128 = _round_up(L, _LANE)
    tile_b, tile_l = _choose_tiles(B, N_pad, L_128, itemsize, vmem_budget_bytes)
    L_pad = _round_up(L_128, tile_l)
    B_pad = _round_up(B, tile_b)
    n_b = B_pad // tile_b
    n_l = L_pad // tile_l
    const_w = n_l == 1  # weights/b1 are grid-constant when L fits in one tile

    # Zero padding keeps the math exact (padded h columns are relu(0+0)=0).
    xp = _pad2(x, B_pad, N_pad)
    w1p = _pad2(w_ih.astype(dtype), N_pad, L_pad)
    w2p = _pad2(w_ho.astype(dtype), L_pad, N_pad)
    b1p = _pad2(b_ih.reshape(1, L).astype(dtype), 1, L_pad)
    b2p = _pad2(b_ho.reshape(1, N).astype(dtype), 1, N_pad)

    bytes_accessed = (
        (xp.size + w1p.size + w2p.size + b1p.size + b2p.size) * itemsize
        + B_pad * N_pad * itemsize
    )
    cost = pl.CostEstimate(
        flops=4 * B_pad * N_pad * L_pad,  # two matmuls: 2*B*N*L each
        transcendentals=0,
        bytes_accessed=bytes_accessed,
    )

    y = pl.pallas_call(
        _dffn_kernel,
        out_shape=jax.ShapeDtypeStruct((B_pad, N_pad), dtype),
        grid_spec=pltpu.PrefetchScalarGridSpec(
            num_scalar_prefetch=0,
            grid=(n_b, n_l),
            in_specs=[
                pl.BlockSpec((tile_b, N_pad), lambda i, l: (i, 0)),         # x
                _block_spec((N_pad, tile_l), lambda i, l: (0, l), const_w),  # W1
                _block_spec((1, tile_l), lambda i, l: (0, l), const_w),      # b1
                _block_spec((tile_l, N_pad), lambda i, l: (l, 0), const_w),  # W2
                _block_spec((1, N_pad), lambda i, l: (0, 0), True),          # b2
            ],
            out_specs=pl.BlockSpec((tile_b, N_pad), lambda i, l: (i, 0)),
            scratch_shapes=[pltpu.VMEM((tile_b, N_pad), jnp.float32)],
        ),
        compiler_params=pltpu.CompilerParams(
            dimension_semantics=("parallel", "arbitrary"),
            vmem_limit_bytes=_VMEM_LIMIT,
        ),
        cost_estimate=cost,
    )(xp, w1p, b1p, w2p, b2p)

    if (B_pad, N_pad) != (B, N):
        y = y[:B, :N]
    return y, x


# ----------------------------- init + reference ------------------------------

def xavier_normal(key, shape_out_in):
    """Mimics nn.init.xavier_normal on a (out, in) PyTorch weight."""
    fan_out, fan_in = shape_out_in
    std = jnp.sqrt(2.0 / (fan_in + fan_out))
    return std * jax.random.normal(key, shape_out_in, dtype=jnp.float32)


def linear_bias_init(key, fan_in, fan_out):
    """Default nn.Linear bias init: U(-1/sqrt(fan_in), 1/sqrt(fan_in))."""
    bound = 1.0 / jnp.sqrt(fan_in)
    return jax.random.uniform(
        key, (fan_out,), dtype=jnp.float32, minval=-bound, maxval=bound
    )


def jax_reference(x, w_ih, b_ih, w_ho, b_ho):
    h = jnp.maximum(x @ w_ih + b_ih, 0.0)
    return jnp.maximum(h @ w_ho + b_ho, 0.0)


def _check(x, w1, b1, w2, b2):
    y_out, x_echo = dffn_forward(x, w1, b1, w2, b2)
    jax.block_until_ready(y_out)
    y_ref = jax_reference(x, w1, b1, w2, b2)
    assert y_out.shape == y_ref.shape, (y_out.shape, y_ref.shape)
    assert x_echo is x
    # Tolerance covers MXU bf16-pass default precision differences vs XLA.
    assert jnp.allclose(y_out, y_ref, atol=2e-2, rtol=2e-2), (
        "mismatch vs reference; max abs diff = "
        f"{jnp.max(jnp.abs(y_out - y_ref))}"
    )


if __name__ == "__main__":
    key = jax.random.PRNGKey(0)
    k_x, k_w1, k_b1, k_w2, k_b2 = jax.random.split(key, 5)

    # Small but lane-dense shapes: N=256, l_dim=128, batch=64 (2 batch tiles).
    B, N, L = 64, 256, 128
    x = jax.random.normal(k_x, (B, N), dtype=jnp.float32)
    w_ih_pt = xavier_normal(k_w1, (L, N))        # ih_matrix.weight : (l_dim, N)
    w_ho_pt = xavier_normal(k_w2, (N, L))        # ho_matrix.weight : (N, l_dim)
    b_ih = linear_bias_init(k_b1, N, L)          # ih_matrix.bias   : (l_dim,)
    b_ho = linear_bias_init(k_b2, L, N)          # ho_matrix.bias   : (N,)
    _check(x, w_ih_pt.T, b_ih, w_ho_pt.T, b_ho)

    # Unaligned toy shapes (original module scale) exercise the padding path.
    B2, N2, L2 = 16, 32, 16
    ks = jax.random.split(jax.random.PRNGKey(1), 5)
    x2 = jax.random.normal(ks[0], (B2, N2), dtype=jnp.float32)
    w1_2 = xavier_normal(ks[1], (L2, N2)).T
    w2_2 = xavier_normal(ks[2], (N2, L2)).T
    b1_2 = linear_bias_init(ks[3], N2, L2)
    b2_2 = linear_bias_init(ks[4], L2, N2)
    _check(x2, w1_2, b1_2, w2_2, b2_2)

    print("KERNEL_OK")
</pallas_src>

<mosaic_0001>
module attributes {stable_mosaic.version = 11 : i64} {
  func.func @_dffn_kernel(%arg0: i32, %arg1: i32, %arg2: memref<32x256xf32, #tpu.memory_space<vmem>>, %arg3: memref<256x128xf32, #tpu.memory_space<vmem>>, %arg4: memref<1x128xf32, #tpu.memory_space<vmem>>, %arg5: memref<128x256xf32, #tpu.memory_space<vmem>>, %arg6: memref<1x256xf32, #tpu.memory_space<vmem>>, %arg7: memref<32x256xf32, #tpu.memory_space<vmem>>, %arg8: memref<32x256xf32, #tpu.memory_space<vmem>>) attributes {dimension_semantics = [#tpu.dimension_semantics<parallel>, #tpu.dimension_semantics<arbitrary>], iteration_bounds = array<i64: 2, 1>, scalar_prefetch = 0 : i64, scratch_operands = 1 : i64, tpu.core_type = #tpu.core_type<tc>, window_params = [{transform_indices = @transform_0, window_bounds = array<i64: 32, 256>}, {pipeline_mode = #tpu.pipeline_mode<synchronous>, transform_indices = @transform_1, window_bounds = array<i64: 256, 128>}, {pipeline_mode = #tpu.pipeline_mode<synchronous>, transform_indices = @transform_2, window_bounds = array<i64: 1, 128>}, {pipeline_mode = #tpu.pipeline_mode<synchronous>, transform_indices = @transform_3, window_bounds = array<i64: 128, 256>}, {pipeline_mode = #tpu.pipeline_mode<synchronous>, transform_indices = @transform_4, window_bounds = array<i64: 1, 256>}, {transform_indices = @transform_5, window_bounds = array<i64: 32, 256>}]} {
    %c0_i32 = arith.constant 0 : i32
    %0 = arith.cmpi eq, %arg1, %c0_i32 : i32
    %1 = arith.extui %0 : i1 to i32
    %c0_i32_0 = arith.constant 0 : i32
    %2 = arith.cmpi ne, %1, %c0_i32_0 : i32
    scf.if %2 {
      %cst_16 = arith.constant 0.000000e+00 : f32
      %19 = vector.broadcast %cst_16 : f32 to vector<32x256xf32>
      %c0_17 = arith.constant 0 : index
      %c0_18 = arith.constant 0 : index
      %20 = vector.load %arg8[%c0_17, %c0_18] : memref<32x256xf32, #tpu.memory_space<vmem>>, vector<32x256xf32>
      tpu.vector_store %arg8[%c0_17, %c0_18], %19 {strides = array<i32>} : memref<32x256xf32, #tpu.memory_space<vmem>>, vector<32x256xf32>,
    } else {
    }
    %c0 = arith.constant 0 : index
    %c0_1 = arith.constant 0 : index
    %3 = vector.load %arg2[%c0, %c0_1] : memref<32x256xf32, #tpu.memory_space<vmem>>, vector<32x256xf32>
    %c0_2 = arith.constant 0 : index
    %c0_3 = arith.constant 0 : index
    %4 = vector.load %arg3[%c0_2, %c0_3] : memref<256x128xf32, #tpu.memory_space<vmem>>, vector<256x128xf32>
    %cst = arith.constant dense<0.000000e+00> : vector<32x128xf32>
    %5 = tpu.matmul %3, %4, %cst {dimension_numbers = #tpu.dot_dimension_numbers<[1], [0], [0], [1], [0, 0, 1, 1], [], []>} : vector<32x256xf32>, vector<256x128xf32>, vector<32x128xf32> -> vector<32x128xf32>
    %c0_4 = arith.constant 0 : index
    %c0_5 = arith.constant 0 : index
    %6 = vector.load %arg4[%c0_4, %c0_5] : memref<1x128xf32, #tpu.memory_space<vmem>>, vector<1x128xf32>
    %7 = vector.broadcast %6 : vector<1x128xf32> to vector<32x128xf32>
    %8 = arith.addf %5, %7 : vector<32x128xf32>
    %cst_6 = arith.constant 0.000000e+00 : f32
    %9 = vector.broadcast %cst_6 : f32 to vector<32x128xf32>
    %10 = arith.maximumf %8, %9 : vector<32x128xf32>
    %c0_7 = arith.constant 0 : index
    %c0_8 = arith.constant 0 : index
    %11 = vector.load %arg8[%c0_7, %c0_8] : memref<32x256xf32, #tpu.memory_space<vmem>>, vector<32x256xf32>
    %c0_9 = arith.constant 0 : index
    %c0_10 = arith.constant 0 : index
    %12 = vector.load %arg5[%c0_9, %c0_10] : memref<128x256xf32, #tpu.memory_space<vmem>>, vector<128x256xf32>
    %cst_11 = arith.constant dense<0.000000e+00> : vector<32x256xf32>
    %13 = tpu.matmul %10, %12, %cst_11 {dimension_numbers = #tpu.dot_dimension_numbers<[1], [0], [0], [1], [0, 0, 1, 1], [], []>} : vector<32x128xf32>, vector<128x256xf32>, vector<32x256xf32> -> vector<32x256xf32>
    %14 = arith.addf %11, %13 : vector<32x256xf32>
    %c0_12 = arith.constant 0 : index
    %c0_13 = arith.constant 0 : index
    %15 = vector.load %arg8[%c0_12, %c0_13] : memref<32x256xf32, #tpu.memory_space<vmem>>, vector<32x256xf32>
    tpu.vector_store %arg8[%c0_12, %c0_13], %14 {strides = array<i32>} : memref<32x256xf32, #tpu.memory_space<vmem>>, vector<32x256xf32>,
    %c0_i32_14 = arith.constant 0 : i32
    %16 = arith.cmpi eq, %arg1, %c0_i32_14 : i32
    %17 = arith.extui %16 : i1 to i32
    %c0_i32_15 = arith.constant 0 : i32
    %18 = arith.cmpi ne, %17, %c0_i32_15 : i32
    scf.if %18 {
      %c0_16 = arith.constant 0 : index
      %c0_17 = arith.constant 0 : index
      %19 = vector.load %arg8[%c0_16, %c0_17] : memref<32x256xf32, #tpu.memory_space<vmem>>, vector<32x256xf32>
      %c0_18 = arith.constant 0 : index
      %c0_19 = arith.constant 0 : index
      %20 = vector.load %arg6[%c0_18, %c0_19] : memref<1x256xf32, #tpu.memory_space<vmem>>, vector<1x256xf32>
      %21 = vector.broadcast %20 : vector<1x256xf32> to vector<32x256xf32>
      %22 = arith.addf %19, %21 : vector<32x256xf32>
      %cst_20 = arith.constant 0.000000e+00 : f32
      %23 = vector.broadcast %cst_20 : f32 to vector<32x256xf32>
      %24 = arith.maximumf %22, %23 : vector<32x256xf32>
      %c0_21 = arith.constant 0 : index
      %c0_22 = arith.constant 0 : index
      %25 = vector.load %arg7[%c0_21, %c0_22] : memref<32x256xf32, #tpu.memory_space<vmem>>, vector<32x256xf32>
      tpu.vector_store %arg7[%c0_21, %c0_22], %24 {strides = array<i32>} : memref<32x256xf32, #tpu.memory_space<vmem>>, vector<32x256xf32>,
    } else {
    }
    return
  }
  func.func @transform_0(%arg0: i32, %arg1: i32) -> (i32, i32) {
    %c0_i32 = arith.constant 0 : i32
    %c0_i32_0 = arith.constant 0 : i32
    return %arg0, %c0_i32 : i32, i32
  }
  func.func @transform_1(%arg0: i32, %arg1: i32) -> (i32, i32) {
    %c0_i32 = arith.constant 0 : i32
    %c0_i32_0 = arith.constant 0 : i32
    return %c0_i32, %arg1 : i32, i32
  }
  func.func @transform_2(%arg0: i32, %arg1: i32) -> (i32, i32) {
    %c0_i32 = arith.constant 0 : i32
    %c0_i32_0 = arith.constant 0 : i32
    return %c0_i32, %arg1 : i32, i32
  }
  func.func @transform_3(%arg0: i32, %arg1: i32) -> (i32, i32) {
    %c0_i32 = arith.constant 0 : i32
    %c0_i32_0 = arith.constant 0 : i32
    return %arg1, %c0_i32 : i32, i32
  }
  func.func @transform_4(%arg0: i32, %arg1: i32) -> (i32, i32) {
    %c0_i32 = arith.constant 0 : i32
    %c0_i32_0 = arith.constant 0 : i32
    %c0_i32_1 = arith.constant 0 : i32
    return %c0_i32, %c0_i32_0 : i32, i32
  }
  func.func @transform_5(%arg0: i32, %arg1: i32) -> (i32, i32) {
    %c0_i32 = arith.constant 0 : i32
    %c0_i32_0 = arith.constant 0 : i32
    return %arg0, %c0_i32 : i32, i32
  }
}

</mosaic_0001>

<llo_original>
// kernel: tpu_custom_call.1
$region0: #{tpu_custom_call.1}
  #allocation0 [shape = 'u32[]', space=smem, size = 0x4, offset = 0x4, fixed_abs, tag = 'smem constant byte address 0x4 - core index']
  #allocation1 [shape = 'u32[144,128]{1,0:T(1,128)}', space=vmem, size = 0x12000, scoped, tag = 'internal scratch']
  #allocation2 [shape = 'f32[32,256]{1,0:T(8,128)}', space=vmem, size = 0x8000, scoped, tag = 'scratch operand']
  %s0 = inlined_call_operand.hbm [shape: f32[64,256], index: 0, kind: input, shape index: {}]
  %s1 = inlined_call_operand.hbm [shape: f32[256,128], index: 1, kind: input, shape index: {}]
  %s2 = inlined_call_operand.hbm [shape: f32[1,128], index: 2, kind: input, shape index: {}]
  %s3 = inlined_call_operand.hbm [shape: f32[128,256], index: 3, kind: input, shape index: {}]
  %s4 = inlined_call_operand.hbm [shape: f32[1,256], index: 4, kind: input, shape index: {}]
  %s5 = inlined_call_operand.hbm [shape: f32[64,256], index: 5, kind: output, shape index: {}]
  %s6 = sld [smem:[#allocation0]]
  $region81: #{tpu_custom_call.1} parent=0
    _
  %s8 = ssub.s32 1, %s6
  %s9 = scalar_select 0, %s8, %s6
  $region1: #{tpu_custom_call.1} parent=0
    #allocation3 [shape = 'u8[65536]{0}', space=vmem, size = 0x10000, scoped, tag = 'input window, operand 0']
    #allocation4 [shape = 's32[2]{0}', space=sflag, size = 0x8, scoped, tag = 'scoped memory for tpu_custom_call.1']
    #allocation5 [shape = 's32[2]{0}', space=sflag, size = 0x8, scoped, tag = 'scoped memory for tpu_custom_call.1']
    #allocation6 [shape = 'u8[131072]{0}', space=vmem, size = 0x20000, scoped, tag = 'input window, operand 1, single buffered']
    #allocation7 [shape = 's32[1]{0}', space=sflag, size = 0x4, scoped, tag = 'scoped memory for tpu_custom_call.1']
    #allocation8 [shape = 'u8[512]{0}', space=vmem, size = 0x400, scoped, tag = 'input window, operand 2, single buffered']
    #allocation9 [shape = 'u8[131072]{0}', space=vmem, size = 0x20000, scoped, tag = 'input window, operand 3, single buffered']
    #allocation10 [shape = 's32[1]{0}', space=sflag, size = 0x4, scoped, tag = 'scoped memory for tpu_custom_call.1']
    #allocation11 [shape = 'u8[1024]{0}', space=vmem, size = 0x400, scoped, tag = 'input window, operand 4, single buffered']
    #allocation12 [shape = 'u8[65536]{0}', space=vmem, size = 0x10000, scoped, tag = 'output window, operand 0']
    %10 = vsyncpa [#allocation4], 0
    %s11 = scalar_lea.sflag [#allocation4], 1
    %12 = vsyncpa %s11, 0
    %13 = vsyncpa [#allocation7], 0
    %14 = vsyncpa [#allocation10], 0
    %15 = vsyncpa [#allocation5], 0
    %s16 = scalar_lea.sflag [#allocation5], 1
    %17 = vsyncpa %s16, 0
    loop: start=0, step=1, limit=4
    $region2: #{tpu_custom_call.1} parent=1 // loop_pre_header
      _
    $region3: #{tpu_custom_call.1} parent=1 // loop_header
      %s19 = sphi 0, %s23
      %p20 = scmp.ge.s32.totalorder %s19, 4
      %s26 = sphi 0, %s38
      %s27 = sphi 0, %s34
      %s28 = sphi 0, %s26
      %s29 = sphi 0, %s27
      %s30 = sphi 0, %s28
      %s31 = sphi 0, %s29
      %s41 = sphi 0, %s43
      %s44 = sphi 0, %s41
      %s45 = sphi 0, %s44
      %s61 = sphi 0, %s45
      %s67 = sphi 0, %s69
      %s70 = sphi 0, %s67
      %s71 = sphi 0, %s70
      %s87 = sphi 0, %s71
      %s93 = sphi 0, %s95
      %s96 = sphi 0, %s93
      %s97 = sphi 0, %s96
      %s113 = sphi 0, %s97
      %s119 = sphi 0, %s121
      %s122 = sphi 0, %s119
      %s123 = sphi 0, %s122
      %s139 = sphi 0, %s123
      %s143 = sphi 0, %s143
      %s145 = sphi 0, %s143
      %s146 = sphi 0, %s145
      %s160 = sphi 0, %s146
      %s166 = sphi 0, %s168
      %s169 = sphi 0, %s166
      %s170 = sphi 0, %s169
      %s186 = sphi 0, %s170
    $region4: #{tpu_custom_call.1} parent=1 // loop_header_branch
      %22 = sbr.rel (%p20) target = $region8
    $region5: #{tpu_custom_call.1} parent=1 // loop_body
      %s24 = ssub.s32 %s19, 1
      %s25 = ssub.s32 %s19, 2
      %s32 = sadd.s32 1, %s27
      %p33 = scmp.ge.s32.totalorder %s32, 1
      %s34 = scalar_select %p33, 0, %s32
      %s35 = sadd.s32 1, %s26
      %s36 = scalar_select %p33, %s35, %s26
      %p37 = scmp.ge.s32.totalorder %s36, 2
      %s38 = scalar_select %p37, 0, %s36
      %s39 = ssub.s32 %s26, %s38
      %p40 = scmp.eq.s32.totalorder %s39, 0
      %s42 = sadd.s32 %s41, 1
      %s43 = scalar_select %p40, %s41, %s42
      %p46 = pneg %p40
      %p47 = scmp.eq.s32.totalorder %s19, 1
      %p48 = por %p46, %p47
      %p49 = scmp.ne.s32.totalorder %s41, %s44
      %p50 = scmp.eq.s32.totalorder %s19, 0
      %p51 = por %p49, %p50
      %p52 = scmp.ne.s32.totalorder %s41, %s44
      %p53 = scmp.eq.s32.totalorder %s24, 1
      %p54 = por %p52, %p53
      %p55 = scmp.ne.s32.totalorder %s44, %s45
      %p56 = scmp.eq.s32.totalorder %s24, 0
      %p57 = por %p55, %p56
      %p58 = scmp.ne.s32.totalorder %s44, %s45
      %p59 = scmp.eq.s32.totalorder %s25, 1
      %p60 = por %p58, %p59
      %p62 = scmp.ne.s32.totalorder %s45, %s61
      %p63 = scmp.eq.s32.totalorder %s25, 0
      %p64 = por %p62, %p63
      %s65 = ssub.s32 %s27, %s34
      %p66 = scmp.eq.s32.totalorder %s65, 0
      %s68 = sadd.s32 %s67, 1
      %s69 = scalar_select %p66, %s67, %s68
      %p72 = pneg %p66
      %p73 = scmp.eq.s32.totalorder %s19, 1
      %p74 = por %p72, %p73
      %p75 = scmp.ne.s32.totalorder %s67, %s70
      %p76 = scmp.eq.s32.totalorder %s19, 0
      %p77 = por %p75, %p76
      %p78 = scmp.ne.s32.totalorder %s67, %s70
      %p79 = scmp.eq.s32.totalorder %s24, 1
      %p80 = por %p78, %p79
      %p81 = scmp.ne.s32.totalorder %s70, %s71
      %p82 = scmp.eq.s32.totalorder %s24, 0
      %p83 = por %p81, %p82
      %p84 = scmp.ne.s32.totalorder %s70, %s71
      %p85 = scmp.eq.s32.totalorder %s25, 1
      %p86 = por %p84, %p85
      %p88 = scmp.ne.s32.totalorder %s71, %s87
      %p89 = scmp.eq.s32.totalorder %s25, 0
      %p90 = por %p88, %p89
      %s91 = ssub.s32 %s27, %s34
      %p92 = scmp.eq.s32.totalorder %s91, 0
      %s94 = sadd.s32 %s93, 1
      %s95 = scalar_select %p92, %s93, %s94
      %p98 = pneg %p92
      %p99 = scmp.eq.s32.totalorder %s19, 1
      %p100 = por %p98, %p99
      %p101 = scmp.ne.s32.totalorder %s93, %s96
      %p102 = scmp.eq.s32.totalorder %s19, 0
      %p103 = por %p101, %p102
      %p104 = scmp.ne.s32.totalorder %s93, %s96
      %p105 = scmp.eq.s32.totalorder %s24, 1
      %p106 = por %p104, %p105
      %p107 = scmp.ne.s32.totalorder %s96, %s97
      %p108 = scmp.eq.s32.totalorder %s24, 0
      %p109 = por %p107, %p108
      %p110 = scmp.ne.s32.totalorder %s96, %s97
      %p111 = scmp.eq.s32.totalorder %s25, 1
      %p112 = por %p110, %p111
      %p114 = scmp.ne.s32.totalorder %s97, %s113
      %p115 = scmp.eq.s32.totalorder %s25, 0
      %p116 = por %p114, %p115
      %s117 = ssub.s32 %s27, %s34
      %p118 = scmp.eq.s32.totalorder %s117, 0
      %s120 = sadd.s32 %s119, 1
      %s121 = scalar_select %p118, %s119, %s120
      %p124 = pneg %p118
      %p125 = scmp.eq.s32.totalorder %s19, 1
      %p126 = por %p124, %p125
      %p127 = scmp.ne.s32.totalorder %s119, %s122
      %p128 = scmp.eq.s32.totalorder %s19, 0
      %p129 = por %p127, %p128
      %p130 = scmp.ne.s32.totalorder %s119, %s122
      %p131 = scmp.eq.s32.totalorder %s24, 1
      %p132 = por %p130, %p131
      %p133 = scmp.ne.s32.totalorder %s122, %s123
      %p134 = scmp.eq.s32.totalorder %s24, 0
      %p135 = por %p133, %p134
      %p136 = scmp.ne.s32.totalorder %s122, %s123
      %p137 = scmp.eq.s32.totalorder %s25, 1
      %p138 = por %p136, %p137
      %p140 = scmp.ne.s32.totalorder %s123, %s139
      %p141 = scmp.eq.s32.totalorder %s25, 0
      %p142 = por %p140, %p141
      %s144 = sadd.s32 %s143, 1
      %p147 = scmp.eq.s32.totalorder %s19, 1
      %p148 = scmp.ne.s32.totalorder %s143, %s145
      %p149 = scmp.eq.s32.totalorder %s19, 0
      %p150 = por %p148, %p149
      %p151 = scmp.ne.s32.totalorder %s143, %s145
      %p152 = scmp.eq.s32.totalorder %s24, 1
      %p153 = por %p151, %p152
      %p154 = scmp.ne.s32.totalorder %s145, %s146
      %p155 = scmp.eq.s32.totalorder %s24, 0
      %p156 = por %p154, %p155
      %p157 = scmp.ne.s32.totalorder %s145, %s146
      %p158 = scmp.eq.s32.totalorder %s25, 1
      %p159 = por %p157, %p158
      %p161 = scmp.ne.s32.totalorder %s146, %s160
      %p162 = scmp.eq.s32.totalorder %s25, 0
      %p163 = por %p161, %p162
      %s164 = ssub.s32 %s26, %s38
      %p165 = scmp.eq.s32.totalorder %s164, 0
      %s167 = sadd.s32 %s166, 1
      %s168 = scalar_select %p165, %s166, %s167
      %p171 = pneg %p165
      %p172 = scmp.eq.s32.totalorder %s19, 1
      %p173 = por %p171, %p172
      %p174 = scmp.ne.s32.totalorder %s166, %s169
      %p175 = scmp.eq.s32.totalorder %s19, 0
      %p176 = por %p174, %p175
      %p177 = scmp.ne.s32.totalorder %s166, %s169
      %p178 = scmp.eq.s32.totalorder %s24, 1
      %p179 = por %p177, %p178
      %p180 = scmp.ne.s32.totalorder %s169, %s170
      %p181 = scmp.eq.s32.totalorder %s24, 0
      %p182 = por %p180, %p181
      %p183 = scmp.ne.s32.totalorder %s169, %s170
      %p184 = scmp.eq.s32.totalorder %s25, 1
      %p185 = por %p183, %p184
      %p187 = scmp.ne.s32.totalorder %s170, %s186
      %p188 = scmp.eq.s32.totalorder %s25, 0
      %p189 = por %p187, %p188
      %p190 = scmp.le.s32.totalorder 1, %s19
      %p191 = scmp.lt.s32.totalorder %s19, 3
      %p192 = pnand %p190, %p191
      %p193 = pneg %p192
      // Predicated region
      $region9: #{tpu_custom_call.1} parent=5 // pred_check
        _
      $region10: #{tpu_custom_call.1} parent=5 // pred_check_branch
        %195 = sbr.rel (%p192) target = $region12
      $region11: #{tpu_custom_call.1} parent=5 // pred_region
        %s196 = ssub.s32 %s19, 1
        // Predicated region
        $region13: #{tpu_custom_call.1} parent=11 // pred_check
          %p197 = pneg %p83
        $region14: #{tpu_custom_call.1} parent=11 // pred_check_branch
          %199 = sbr.rel (%p197) target = $region16
        $region15: #{tpu_custom_call.1} parent=11 // pred_region
          %s201 = ssub.s32 4096, 4096
          %202 = vsyncadd [#allocation7], %s201
          %s203 = smul.addr %s29, 128
          %s204 = scalar_lea.hbm %s1, %s203
          %s205 = sshll.u32 [#allocation6], 4
          %s206 = int_to_ptr.vmem [resolvable:$true] %s205
          %211 = dma.hbm_to_vmem [thread:$0]  %s204, 4096, %s206, [#allocation7], 128, 128, 8
        $region16: #{tpu_custom_call.1} parent=11 // pred_fallthru
          _
        // Predicated region
        $region17: #{tpu_custom_call.1} parent=11 // pred_check
          %p212 = pneg %p109
        $region18: #{tpu_custom_call.1} parent=11 // pred_check_branch
          %214 = sbr.rel (%p212) target = $region20
        $region19: #{tpu_custom_call.1} parent=11 // pred_region
          %s216 = ssub.s32 16, 16
          %217 = vsyncadd [#allocation7], %s216
          %s218 = smul.addr %s29, 16
          %s219 = scalar_lea.hbm %s2, %s218
          %s221 = sshll.u32 [#allocation8], 4
          %s222 = int_to_ptr.vmem [resolvable:$true] %s221
          %224 = dma.hbm_to_vmem [thread:$0]  %s219, 16, %s222, [#allocation7]
        $region20: #{tpu_custom_call.1} parent=11 // pred_fallthru
          _
        // Predicated region
        $region21: #{tpu_custom_call.1} parent=11 // pred_check
          %p225 = pneg %p135
        $region22: #{tpu_custom_call.1} parent=11 // pred_check_branch
          %227 = sbr.rel (%p225) target = $region24
        $region23: #{tpu_custom_call.1} parent=11 // pred_region
          %s228 = smul.u32 16, %s29
          %s230 = ssub.s32 4096, 4096
          %231 = vsyncadd [#allocation10], %s230
          %s232 = smul.addr %s228, 2
          %s233 = smul.addr %s232, 128
          %s234 = scalar_lea.hbm %s3, %s233
          %s235 = sshll.u32 [#allocation9], 4
          %s236 = int_to_ptr.vmem [resolvable:$true] %s235
          %241 = dma.hbm_to_vmem [thread:$0]  %s234, 4096, %s236, [#allocation10], 256, 256, 16
        $region24: #{tpu_custom_call.1} parent=11 // pred_fallthru
          _
        // Predicated region
        $region25: #{tpu_custom_call.1} parent=11 // pred_check
          %p242 = pneg %p156
        $region26: #{tpu_custom_call.1} parent=11 // pred_check_branch
          %244 = sbr.rel (%p242) target = $region28
        $region27: #{tpu_custom_call.1} parent=11 // pred_region
          %s246 = ssub.s32 32, 32
          %247 = vsyncadd [#allocation10], %s246
          %s249 = sshll.u32 [#allocation11], 4
          %s250 = int_to_ptr.vmem [resolvable:$true] %s249
          %252 = dma.hbm_to_vmem [thread:$0]  %s4, 32, %s250, [#allocation10]
        $region28: #{tpu_custom_call.1} parent=11 // pred_fallthru
          _
      $region12: #{tpu_custom_call.1} parent=5 // pred_fallthru
        _
      %p253 = scmp.lt.s32.totalorder %s19, 2
      // Predicated region
      $region29: #{tpu_custom_call.1} parent=5 // pred_check
        %p254 = pneg %p253
      $region30: #{tpu_custom_call.1} parent=5 // pred_check_branch
        %256 = sbr.rel (%p254) target = $region32
      $region31: #{tpu_custom_call.1} parent=5 // pred_region
        // Predicated region
        $region33: #{tpu_custom_call.1} parent=31 // pred_check
          %p257 = pneg %p51
        $region34: #{tpu_custom_call.1} parent=31 // pred_check_branch
          %259 = sbr.rel (%p257) target = $region36
        $region35: #{tpu_custom_call.1} parent=31 // pred_region
          %s260 = sand.u32 %s41, 1
          %s261 = scalar_lea.sflag [#allocation4], %s260
          %s262 = sand.u32 %s41, 1
          %s263 = smul.addr %s262, 64
          %s264 = scalar_lea.vmem [#allocation3], %s263
          %s265 = smul.u32 4, %s26
          %s267 = ssub.s32 1024, 1024
          %268 = vsyncadd %s261, %s267
          %s269 = smul.addr %s265, 2
          %s270 = smul.addr %s269, 128
          %s271 = scalar_lea.hbm %s0, %s270
          %s272 = sshll.u32 %s264, 4
          %s273 = int_to_ptr.vmem [resolvable:$true] %s272
          %278 = dma.hbm_to_vmem [thread:$0]  %s271, 1024, %s273, %s261, 256, 256, 16
        $region36: #{tpu_custom_call.1} parent=31 // pred_fallthru
          _
      $region32: #{tpu_custom_call.1} parent=5 // pred_fallthru
        _
      %p279 = scmp.le.s32.totalorder 1, %s19
      %p280 = scmp.lt.s32.totalorder %s19, 3
      %p281 = pnand %p279, %p280
      %p282 = pneg %p281
      // Predicated region
      $region37: #{tpu_custom_call.1} parent=5 // pred_check
        _
      $region38: #{tpu_custom_call.1} parent=5 // pred_check_branch
        %284 = sbr.rel (%p281) target = $region40
      $region39: #{tpu_custom_call.1} parent=5 // pred_region
        %s285 = ssub.s32 %s19, 1
        %s286 = sand.u32 %s44, 1
        %s287 = scalar_lea.sflag [#allocation4], %s286
        %s288 = sand.u32 %s44, 1
        %s289 = smul.addr %s288, 64
        %s290 = scalar_lea.vmem [#allocation3], %s289
        // Predicated region
        $region41: #{tpu_custom_call.1} parent=39 // pred_check
          %p291 = pneg %p57
        $region42: #{tpu_custom_call.1} parent=39 // pred_check_branch
          %293 = sbr.rel (%p291) target = $region44
        $region43: #{tpu_custom_call.1} parent=39 // pred_region
          %294 = dma.done %s287, 1024
        $region44: #{tpu_custom_call.1} parent=39 // pred_fallthru
          _
        // Predicated region
        $region45: #{tpu_custom_call.1} parent=39 // pred_check
          %p295 = pneg %p83
        $region46: #{tpu_custom_call.1} parent=39 // pred_check_branch
          %297 = sbr.rel (%p295) target = $region48
        $region47: #{tpu_custom_call.1} parent=39 // pred_region
          %298 = dma.done [#allocation7], 4096
        $region48: #{tpu_custom_call.1} parent=39 // pred_fallthru
          _
        // Predicated region
        $region49: #{tpu_custom_call.1} parent=39 // pred_check
          %p299 = pneg %p109
        $region50: #{tpu_custom_call.1} parent=39 // pred_check_branch
          %301 = sbr.rel (%p299) target = $region52
        $region51: #{tpu_custom_call.1} parent=39 // pred_region
          %302 = dma.done [#allocation7], 16
        $region52: #{tpu_custom_call.1} parent=39 // pred_fallthru
          _
        // Predicated region
        $region53: #{tpu_custom_call.1} parent=39 // pred_check
          %p303 = pneg %p135
        $region54: #{tpu_custom_call.1} parent=39 // pred_check_branch
          %305 = sbr.rel (%p303) target = $region56
        $region55: #{tpu_custom_call.1} parent=39 // pred_region
          %306 = dma.done [#allocation10], 4096
        $region56: #{tpu_custom_call.1} parent=39 // pred_fallthru
          _
        // Predicated region
        $region57: #{tpu_custom_call.1} parent=39 // pred_check
          %p307 = pneg %p156
        $region58: #{tpu_custom_call.1} parent=39 // pred_check_branch
          %309 = sbr.rel (%p307) target = $region60
        $region59: #{tpu_custom_call.1} parent=39 // pred_region
          %310 = dma.done [#allocation10], 32
        $region60: #{tpu_custom_call.1} parent=39 // pred_fallthru
          _
        %s311 = sand.u32 %s44, 1
        %s312 = scalar_lea.sflag [#allocation4], %s311
        %s313 = sand.u32 %s44, 1
        %s314 = smul.addr %s313, 64
        %s315 = scalar_lea.vmem [#allocation3], %s314
        %p316 = pneg %p57
        %p317 = pneg %p54
        %p318 = pneg %p83
        %p319 = pneg %p80
        %p320 = pneg %p109
        %p321 = pneg %p106
        %p322 = pneg %p135
        %p323 = pneg %p132
        %p324 = pneg %p156
        %p325 = pneg %p153
        %p326 = pneg %p182
        %p327 = pneg %p179
        %s328 = sand.u32 %s169, 1
        %s329 = scalar_lea.sflag [#allocation5], %s328
        %s330 = sand.u32 %s169, 1
        %s331 = smul.addr %s330, 64
        %s332 = scalar_lea.vmem [#allocation12], %s331
        %s333 = smul.u32 4, %s28
        %s334 = smul.u32 16, %s29
        %s335 = smul.u32 4, %s28
        %p336 = scmp.eq.s32.totalorder %s29, 0
        // Predicated region
        $region61: #{tpu_custom_call.1} parent=39 // pred_check
          %p337 = pneg %p336
        $region62: #{tpu_custom_call.1} parent=39 // pred_check_branch
          %339 = sbr.rel (%p337) target = $region64
        $region63: #{tpu_custom_call.1} parent=39 // pred_region
          %340 = vst [vmem:[#allocation2] sm:$0xff] 0.0
          %341 = vst [vmem:[#allocation2 + $0x8] sm:$0xff] 0.0
          %342 = vst [vmem:[#allocation2 + $0x10] sm:$0xff] 0.0
          %343 = vst [vmem:[#allocation2 + $0x18] sm:$0xff] 0.0
          %344 = vst [vmem:[#allocation2 + $0x20] sm:$0xff] 0.0
          %345 = vst [vmem:[#allocation2 + $0x28] sm:$0xff] 0.0
          %346 = vst [vmem:[#allocation2 + $0x30] sm:$0xff] 0.0
          %347 = vst [vmem:[#allocation2 + $0x38] sm:$0xff] 0.0
        $region64: #{tpu_custom_call.1} parent=39 // pred_fallthru
          _
        %v348 = vld [vmem:[%s290] sm:$0xff]
        %v349 = vld [vmem:[%s290 + $0x8] sm:$0xff]
        %v350 = vld [vmem:[%s290 + $0x10] sm:$0xff]
        %v351 = vld [vmem:[%s290 + $0x18] sm:$0xff]
        %v352 = vld [vmem:[%s290 + $0x20] sm:$0xff]
        %v353 = vld [vmem:[%s290 + $0x28] sm:$0xff]
        %v354 = vld [vmem:[%s290 + $0x30] sm:$0xff]
        %v355 = vld [vmem:[%s290 + $0x38] sm:$0xff]
        %v356 = vld [vmem:[#allocation6] sm:$0xff]
        %v357 = vld [vmem:[#allocation6 + $0x8] sm:$0xff]
        %v358 = vld [vmem:[#allocation6 + $0x10] sm:$0xff]
        %v359 = vld [vmem:[#allocation6 + $0x18] sm:$0xff]
        %v360 = vld [vmem:[#allocation6 + $0x20] sm:$0xff]
        %v361 = vld [vmem:[#allocation6 + $0x28] sm:$0xff]
        %v362 = vld [vmem:[#allocation6 + $0x30] sm:$0xff]
        %v363 = vld [vmem:[#allocation6 + $0x38] sm:$0xff]
        %v364 = vld [vmem:[#allocation6 + $0x40] sm:$0xff]
        %v365 = vld [vmem:[#allocation6 + $0x48] sm:$0xff]
        %v366 = vld [vmem:[#allocation6 + $0x50] sm:$0xff]
        %v367 = vld [vmem:[#allocation6 + $0x58] sm:$0xff]
        %v368 = vld [vmem:[#allocation6 + $0x60] sm:$0xff]
        %v369 = vld [vmem:[#allocation6 + $0x68] sm:$0xff]
        %v370 = vld [vmem:[#allocation6 + $0x70] sm:$0xff]
        %v371 = vld [vmem:[#allocation6 + $0x78] sm:$0xff]
        %v372 = vld [vmem:[#allocation6 + $0x80] sm:$0xff]
        %v373 = vld [vmem:[#allocation6 + $0x88] sm:$0xff]
        %v374 = vld [vmem:[#allocation6 + $0x90] sm:$0xff]
        %v375 = vld [vmem:[#allocation6 + $0x98] sm:$0xff]
        %v376 = vld [vmem:[#allocation6 + $0xa0] sm:$0xff]
        %v377 = vld [vmem:[#allocation6 + $0xa8] sm:$0xff]
        %v378 = vld [vmem:[#allocation6 + $0xb0] sm:$0xff]
        %v379 = vld [vmem:[#allocation6 + $0xb8] sm:$0xff]
        %v380 = vld [vmem:[#allocation6 + $0xc0] sm:$0xff]
        %v381 = vld [vmem:[#allocation6 + $0xc8] sm:$0xff]
        %v382 = vld [vmem:[#allocation6 + $0xd0] sm:$0xff]
        %v383 = vld [vmem:[#allocation6 + $0xd8] sm:$0xff]
        %v384 = vld [vmem:[#allocation6 + $0xe0] sm:$0xff]
        %v385 = vld [vmem:[#allocation6 + $0xe8] sm:$0xff]
        %v386 = vld [vmem:[#allocation6 + $0xf0] sm:$0xff]
        %v387 = vld [vmem:[#allocation6 + $0xf8] sm:$0xff]
        %v388 = vld [vmem:[#allocation8] sm:$0x1]
        %v390 = vlaneseq
        %v391 = vshrl.u32 %v390, 7
        %v392 = vsub.s32 0, %v391
        %v393 = vrot.slane %v388, %v392
        %395 = vmatprep.subr.mxu0 0.0
        %396 = vmatpush1.msra.mxu0 %v356
        %397 = vmatprep.subr.mxu0 0.0
        %398 = vmatpush1.msra.mxu0 %v357
        %399 = vmatprep.subr.mxu0 0.0
        %400 = vmatpush1.msra.mxu0 %v358
        %401 = vmatprep.subr.mxu0 0.0
        %402 = vmatpush1.msra.mxu0 %v359
        %403 = vmatprep.subr.mxu0 0.0
        %404 = vmatpush1.msra.mxu0 %v360
        %405 = vmatprep.subr.mxu0 0.0
        %406 = vmatpush1.msra.mxu0 %v361
        %407 = vmatprep.subr.mxu0 0.0
        %408 = vmatpush1.msra.mxu0 %v362
        %409 = vmatprep.subr.mxu0 0.0
        %410 = vmatpush1.msra.mxu0 %v363
        %411 = vmatprep.subr.mxu0 0.0
        %412 = vmatpush1.msra.mxu0 %v364
        %413 = vmatprep.subr.mxu0 0.0
        %414 = vmatpush1.msra.mxu0 %v365
        %415 = vmatprep.subr.mxu0 0.0
        %416 = vmatpush1.msra.mxu0 %v366
        %417 = vmatprep.subr.mxu0 0.0
        %418 = vmatpush1.msra.mxu0 %v367
        %419 = vmatprep.subr.mxu0 0.0
        %420 = vmatpush1.msra.mxu0 %v368
        %421 = vmatprep.subr.mxu0 0.0
        %422 = vmatpush1.msra.mxu0 %v369
        %423 = vmatprep.subr.mxu0 0.0
        %424 = vmatpush1.msra.mxu0 %v370
        %425 = vmatprep.subr.mxu0 0.0
        %426 = vmatpush1.msra.mxu0 %v371
        %427 = vmatprep.subr.mxu0 0.0
        %428 = vmatpush1.msra.mxu0 %v372
        %429 = vmatprep.subr.mxu0 0.0
        %430 = vmatpush1.msra.mxu0 %v373
        %431 = vmatprep.subr.mxu0 0.0
        %432 = vmatpush1.msra.mxu0 %v374
        %433 = vmatprep.subr.mxu0 0.0
        %434 = vmatpush1.msra.mxu0 %v375
        %435 = vmatprep.subr.mxu0 0.0
        %436 = vmatpush1.msra.mxu0 %v376
        %437 = vmatprep.subr.mxu0 0.0
        %438 = vmatpush1.msra.mxu0 %v377
        %439 = vmatprep.subr.mxu0 0.0
        %440 = vmatpush1.msra.mxu0 %v378
        %441 = vmatprep.subr.mxu0 0.0
        %442 = vmatpush1.msra.mxu0 %v379
        %443 = vmatprep.subr.mxu0 0.0
        %444 = vmatpush1.msra.mxu0 %v380
        %445 = vmatprep.subr.mxu0 0.0
        %446 = vmatpush1.msra.mxu0 %v381
        %447 = vmatprep.subr.mxu0 0.0
        %448 = vmatpush1.msra.mxu0 %v382
        %449 = vmatprep.subr.mxu0 0.0
        %450 = vmatpush1.msra.mxu0 %v383
        %451 = vmatprep.subr.mxu0 0.0
        %452 = vmatpush1.msra.mxu0 %v384
        %453 = vmatprep.subr.mxu0 0.0
        %454 = vmatpush1.msra.mxu0 %v385
        %455 = vmatprep.subr.mxu0 0.0
        %456 = vmatpush1.msra.mxu0 %v386
        %457 = vmatprep.subr.mxu0 0.0
        %458 = vmatpush1.msra.mxu0 %v387
        %459 = vmatprep.mubr.f32.mxu0 %v349
        %460 = vmatmul.mubr.f32.gmra.mrb[0].mxu0 %v348
        %v461 = vpop.f32.mrb[0].mxu0
        %v462 = vadd.f32 %v393, %v461
        %v463 = vpop.f32.mrb[0].mxu0
        %464 = vmatprep.mubr.f32.mxu0 %v351
        %465 = vmatmul.mubr.f32.gmra.mrb[0].mxu0 %v350
        %v466 = vpop.f32.mrb[0].mxu0
        %v467 = vadd.f32 %v393, %v466
        %v468 = vpop.f32.mrb[0].mxu0
        %469 = vmatprep.mubr.f32.mxu0 %v353
        %470 = vmatmul.mubr.f32.gmra.mrb[0].mxu0 %v352
        %v471 = vpop.f32.mrb[0].mxu0
        %v472 = vadd.f32 %v393, %v471
        %v473 = vpop.f32.mrb[0].mxu0
        %474 = vmatprep.mubr.f32.mxu0 %v355
        %475 = vmatmul.mubr.f32.gmra.mrb[0].mxu0 %v354
        %v476 = vpop.f32.mrb[0].mxu0
        %v477 = vadd.f32 %v393, %v476
        %v478 = vpop.f32.mrb[0].mxu0
        %479 = vdwg.mxu0
        %v480 = vmax.f32 %v462, 0.0
        %v481 = vmax.f32 %v467, 0.0
        %v482 = vmax.f32 %v472, 0.0
        %v483 = vmax.f32 %v477, 0.0
        %v484 = vld [vmem:[#allocation2] sm:$0xff]
        %v485 = vld [vmem:[#allocation2 + $0x8] sm:$0xff]
        %v486 = vld [vmem:[#allocation2 + $0x10] sm:$0xff]
        %v487 = vld [vmem:[#allocation2 + $0x18] sm:$0xff]
        %v488 = vld [vmem:[#allocation2 + $0x20] sm:$0xff]
        %v489 = vld [vmem:[#allocation2 + $0x28] sm:$0xff]
        %v490 = vld [vmem:[#allocation2 + $0x30] sm:$0xff]
        %v491 = vld [vmem:[#allocation2 + $0x38] sm:$0xff]
        %v492 = vld [vmem:[#allocation9] sm:$0xff]
        %v493 = vld [vmem:[#allocation9 + $0x8] sm:$0xff]
        %v494 = vld [vmem:[#allocation9 + $0x10] sm:$0xff]
        %v495 = vld [vmem:[#allocation9 + $0x18] sm:$0xff]
        %v496 = vld [vmem:[#allocation9 + $0x20] sm:$0xff]
        %v497 = vld [vmem:[#allocation9 + $0x28] sm:$0xff]
        %v498 = vld [vmem:[#allocation9 + $0x30] sm:$0xff]
        %v499 = vld [vmem:[#allocation9 + $0x38] sm:$0xff]
        %v500 = vld [vmem:[#allocation9 + $0x40] sm:$0xff]
        %v501 = vld [vmem:[#allocation9 + $0x48] sm:$0xff]
        %v502 = vld [vmem:[#allocation9 + $0x50] sm:$0xff]
        %v503 = vld [vmem:[#allocation9 + $0x58] sm:$0xff]
        %v504 = vld [vmem:[#allocation9 + $0x60] sm:$0xff]
        %v505 = vld [vmem:[#allocation9 + $0x68] sm:$0xff]
        %v506 = vld [vmem:[#allocation9 + $0x70] sm:$0xff]
        %v507 = vld [vmem:[#allocation9 + $0x78] sm:$0xff]
        %v508 = vld [vmem:[#allocation9 + $0x80] sm:$0xff]
        %v509 = vld [vmem:[#allocation9 + $0x88] sm:$0xff]
        %v510 = vld [vmem:[#allocation9 + $0x90] sm:$0xff]
        %v511 = vld [vmem:[#allocation9 + $0x98] sm:$0xff]
        %v512 = vld [vmem:[#allocation9 + $0xa0] sm:$0xff]
        %v513 = vld [vmem:[#allocation9 + $0xa8] sm:$0xff]
        %v514 = vld [vmem:[#allocation9 + $0xb0] sm:$0xff]
        %v515 = vld [vmem:[#allocation9 + $0xb8] sm:$0xff]
        %v516 = vld [vmem:[#allocation9 + $0xc0] sm:$0xff]
        %v517 = vld [vmem:[#allocation9 + $0xc8] sm:$0xff]
        %v518 = vld [vmem:[#allocation9 + $0xd0] sm:$0xff]
        %v519 = vld [vmem:[#allocation9 + $0xd8] sm:$0xff]
        %v520 = vld [vmem:[#allocation9 + $0xe0] sm:$0xff]
        %v521 = vld [vmem:[#allocation9 + $0xe8] sm:$0xff]
        %v522 = vld [vmem:[#allocation9 + $0xf0] sm:$0xff]
        %v523 = vld [vmem:[#allocation9 + $0xf8] sm:$0xff]
        %524 = vmatprep.subr.mxu0 %v493
        %525 = vmatpush1.msra.mxu0 %v492
        %526 = vmatprep.subr.mxu0 %v495
        %527 = vmatpush1.msra.mxu0 %v494
        %528 = vmatprep.subr.mxu0 %v497
        %529 = vmatpush1.msra.mxu0 %v496
        %530 = vmatprep.subr.mxu0 %v499
        %531 = vmatpush1.msra.mxu0 %v498
        %532 = vmatprep.subr.mxu0 %v501
        %533 = vmatpush1.msra.mxu0 %v500
        %534 = vmatprep.subr.mxu0 %v503
        %535 = vmatpush1.msra.mxu0 %v502
        %536 = vmatprep.subr.mxu0 %v505
        %537 = vmatpush1.msra.mxu0 %v504
        %538 = vmatprep.subr.mxu0 %v507
        %539 = vmatpush1.msra.mxu0 %v506
        %540 = vmatprep.subr.mxu0 %v509
        %541 = vmatpush1.msra.mxu0 %v508
        %542 = vmatprep.subr.mxu0 %v511
        %543 = vmatpush1.msra.mxu0 %v510
        %544 = vmatprep.subr.mxu0 %v513
        %545 = vmatpush1.msra.mxu0 %v512
        %546 = vmatprep.subr.mxu0 %v515
        %547 = vmatpush1.msra.mxu0 %v514
        %548 = vmatprep.subr.mxu0 %v517
        %549 = vmatpush1.msra.mxu0 %v516
        %550 = vmatprep.subr.mxu0 %v519
        %551 = vmatpush1.msra.mxu0 %v518
        %552 = vmatprep.subr.mxu0 %v521
        %553 = vmatpush1.msra.mxu0 %v520
        %554 = vmatprep.subr.mxu0 %v523
        %555 = vmatpush1.msra.mxu0 %v522
        %556 = vmatprep.subr.mxu0 0.0
        %557 = vmatpush1.msra.mxu0 0.0
        %558 = vmatprep.subr.mxu0 0.0
        %559 = vmatpush1.msra.mxu0 0.0
        %560 = vmatprep.subr.mxu0 0.0
        %561 = vmatpush1.msra.mxu0 0.0
        %562 = vmatprep.subr.mxu0 0.0
        %563 = vmatpush1.msra.mxu0 0.0
        %564 = vmatprep.subr.mxu0 0.0
        %565 = vmatpush1.msra.mxu0 0.0
        %566 = vmatprep.subr.mxu0 0.0
        %567 = vmatpush1.msra.mxu0 0.0
        %568 = vmatprep.subr.mxu0 0.0
        %569 = vmatpush1.msra.mxu0 0.0
        %570 = vmatprep.subr.mxu0 0.0
        %571 = vmatpush1.msra.mxu0 0.0
        %572 = vmatprep.subr.mxu0 0.0
        %573 = vmatpush1.msra.mxu0 0.0
        %574 = vmatprep.subr.mxu0 0.0
        %575 = vmatpush1.msra.mxu0 0.0
        %576 = vmatprep.subr.mxu0 0.0
        %577 = vmatpush1.msra.mxu0 0.0
        %578 = vmatprep.subr.mxu0 0.0
        %579 = vmatpush1.msra.mxu0 0.0
        %580 = vmatprep.subr.mxu0 0.0
        %581 = vmatpush1.msra.mxu0 0.0
        %582 = vmatprep.subr.mxu0 0.0
        %583 = vmatpush1.msra.mxu0 0.0
        %584 = vmatprep.subr.mxu0 0.0
        %585 = vmatpush1.msra.mxu0 0.0
        %586 = vmatprep.subr.mxu0 0.0
        %587 = vmatpush1.msra.mxu0 0.0
        %588 = vmatprep.mubr.f32.mxu0 0.0
        %589 = vmatmul.mubr.f32.gmra.mrb[0].mxu0 %v480
        %v590 = vpop.f32.mrb[0].mxu0
        %v591 = vadd.f32 0.0, %v590
        %v592 = vpop.f32.mrb[0].mxu0
        %v593 = vadd.f32 0.0, %v592
        %594 = vmatprep.mubr.f32.mxu0 0.0
        %595 = vmatmul.mubr.f32.gmra.mrb[0].mxu0 %v481
        %v596 = vpop.f32.mrb[0].mxu0
        %v597 = vadd.f32 0.0, %v596
        %v598 = vpop.f32.mrb[0].mxu0
        %v599 = vadd.f32 0.0, %v598
        %600 = vmatprep.mubr.f32.mxu0 0.0
        %601 = vmatmul.mubr.f32.gmra.mrb[0].mxu0 %v482
        %v602 = vpop.f32.mrb[0].mxu0
        %v603 = vadd.f32 0.0, %v602
        %v604 = vpop.f32.mrb[0].mxu0
        %v605 = vadd.f32 0.0, %v604
        %606 = vmatprep.mubr.f32.mxu0 0.0
        %607 = vmatmul.mubr.f32.gmra.mrb[0].mxu0 %v483
        %v608 = vpop.f32.mrb[0].mxu0
        %v609 = vadd.f32 0.0, %v608
        %v610 = vpop.f32.mrb[0].mxu0
        %v611 = vadd.f32 0.0, %v610
        %612 = vdwg.mxu0
        %v613 = vadd.f32 %v484, %v591
        %v614 = vadd.f32 %v485, %v593
        %v615 = vadd.f32 %v486, %v597
        %v616 = vadd.f32 %v487, %v599
        %v617 = vadd.f32 %v488, %v603
        %v618 = vadd.f32 %v489, %v605
        %v619 = vadd.f32 %v490, %v609
        %v620 = vadd.f32 %v491, %v611
        %621 = vst [vmem:[#allocation2] sm:$0xff] %v613
        %622 = vst [vmem:[#allocation2 + $0x8] sm:$0xff] %v614
        %623 = vst [vmem:[#allocation2 + $0x10] sm:$0xff] %v615
        %624 = vst [vmem:[#allocation2 + $0x18] sm:$0xff] %v616
        %625 = vst [vmem:[#allocation2 + $0x20] sm:$0xff] %v617
        %626 = vst [vmem:[#allocation2 + $0x28] sm:$0xff] %v618
        %627 = vst [vmem:[#allocation2 + $0x30] sm:$0xff] %v619
        %628 = vst [vmem:[#allocation2 + $0x38] sm:$0xff] %v620
        // Predicated region
        $region65: #{tpu_custom_call.1} parent=39 // pred_check
          %p629 = pneg %p336
        $region66: #{tpu_custom_call.1} parent=39 // pred_check_branch
          %631 = sbr.rel (%p629) target = $region68
        $region67: #{tpu_custom_call.1} parent=39 // pred_region
          %v632 = vld [vmem:[#allocation2] sm:$0xff]
          %v633 = vld [vmem:[#allocation2 + $0x8] sm:$0xff]
          %v634 = vld [vmem:[#allocation2 + $0x10] sm:$0xff]
          %v635 = vld [vmem:[#allocation2 + $0x18] sm:$0xff]
          %v636 = vld [vmem:[#allocation2 + $0x20] sm:$0xff]
          %v637 = vld [vmem:[#allocation2 + $0x28] sm:$0xff]
          %v638 = vld [vmem:[#allocation2 + $0x30] sm:$0xff]
          %v639 = vld [vmem:[#allocation2 + $0x38] sm:$0xff]
          %v640 = vld [vmem:[#allocation11] sm:$0x3]
          %v642 = vlaneseq
          %v643 = vshrl.u32 %v642, 7
          %v644 = vsub.s32 0, %v643
          %v645 = vrot.slane %v640, %v644
          %v646 = vlaneseq
          %v647 = vshrl.u32 %v646, 7
          %v648 = vsub.s32 1, %v647
          %v649 = vrot.slane %v640, %v648
          %v652 = vadd.f32 %v632, %v645
          %v653 = vadd.f32 %v633, %v649
          %v654 = vadd.f32 %v634, %v645
          %v655 = vadd.f32 %v635, %v649
          %v656 = vadd.f32 %v636, %v645
          %v657 = vadd.f32 %v637, %v649
          %v658 = vadd.f32 %v638, %v645
          %v659 = vadd.f32 %v639, %v649
          %v660 = vmax.f32 %v652, 0.0
          %v661 = vmax.f32 %v653, 0.0
          %v662 = vmax.f32 %v654, 0.0
          %v663 = vmax.f32 %v655, 0.0
          %v664 = vmax.f32 %v656, 0.0
          %v665 = vmax.f32 %v657, 0.0
          %v666 = vmax.f32 %v658, 0.0
          %v667 = vmax.f32 %v659, 0.0
          %668 = vst [vmem:[%s332] sm:$0xff] %v660
          %669 = vst [vmem:[%s332 + $0x8] sm:$0xff] %v661
          %670 = vst [vmem:[%s332 + $0x10] sm:$0xff] %v662
          %671 = vst [vmem:[%s332 + $0x18] sm:$0xff] %v663
          %672 = vst [vmem:[%s332 + $0x20] sm:$0xff] %v664
          %673 = vst [vmem:[%s332 + $0x28] sm:$0xff] %v665
          %674 = vst [vmem:[%s332 + $0x30] sm:$0xff] %v666
          %675 = vst [vmem:[%s332 + $0x38] sm:$0xff] %v667
        $region68: #{tpu_custom_call.1} parent=39 // pred_fallthru
          _
        %s676 = sand.u32 %s169, 1
        %s677 = scalar_lea.sflag [#allocation5], %s676
        %s678 = sand.u32 %s169, 1
        %s679 = smul.addr %s678, 64
        %s680 = scalar_lea.vmem [#allocation12], %s679
        // Predicated region
        $region69: #{tpu_custom_call.1} parent=39 // pred_check
          %p681 = pneg %p179
        $region70: #{tpu_custom_call.1} parent=39 // pred_check_branch
          %683 = sbr.rel (%p681) target = $region72
        $region71: #{tpu_custom_call.1} parent=39 // pred_region
          %s684 = smul.u32 4, %s28
          %s686 = ssub.s32 1024, 1024
          %687 = vsyncadd %s677, %s686
          %s688 = smul.addr %s684, 2
          %s689 = smul.addr %s688, 128
          %s690 = scalar_lea.hbm %s5, %s689
          %s691 = sshll.u32 %s680, 4
          %s692 = int_to_ptr.vmem [resolvable:$true] %s691
          %697 = dma.vmem_to_hbm [thread:$0]  %s692, 1024, %s690, %s677, 256, 256, 16
        $region72: #{tpu_custom_call.1} parent=39 // pred_fallthru
          _
      $region40: #{tpu_custom_call.1} parent=5 // pred_fallthru
        _
      %p698 = scmp.le.s32.totalorder 2, %s19
      // Predicated region
      $region73: #{tpu_custom_call.1} parent=5 // pred_check
        %p699 = pneg %p698
      $region74: #{tpu_custom_call.1} parent=5 // pred_check_branch
        %701 = sbr.rel (%p699) target = $region76
      $region75: #{tpu_custom_call.1} parent=5 // pred_region
        %s702 = ssub.s32 %s19, 2
        // Predicated region
        $region77: #{tpu_custom_call.1} parent=75 // pred_check
          %p703 = pneg %p185
        $region78: #{tpu_custom_call.1} parent=75 // pred_check_branch
          %705 = sbr.rel (%p703) target = $region80
        $region79: #{tpu_custom_call.1} parent=75 // pred_region
          %s706 = sand.u32 %s170, 1
          %s707 = scalar_lea.sflag [#allocation5], %s706
          %s708 = sand.u32 %s170, 1
          %s709 = smul.addr %s708, 64
          %s710 = scalar_lea.vmem [#allocation12], %s709
          %711 = dma.done %s707, 1024
        $region80: #{tpu_custom_call.1} parent=75 // pred_fallthru
          _
      $region76: #{tpu_custom_call.1} parent=5 // pred_fallthru
        _
    $region6: #{tpu_custom_call.1} parent=1 // loop_footer
      %s23 = sadd.s32 1, %s19
    $region7: #{tpu_custom_call.1} parent=1 // loop_footer_branch
      %18 = sbr.rel target = $region3
    $region8: #{tpu_custom_call.1} parent=1 // loop_exit
      _
    %712 = vsyncpa [#allocation4], 1
    %s713 = scalar_lea.sflag [#allocation4], 1
    %714 = vsyncpa %s713, 1
    %715 = vsyncpa [#allocation7], 1
    %716 = vsyncpa [#allocation10], 1
    %717 = vsyncpa [#allocation5], 1
    %s718 = scalar_lea.sflag [#allocation5], 1
    %719 = vsyncpa %s718, 1

</llo_original>
